<compile_context>
chip_gen: v5e
topology: v5e:2x2
jax: 0.10.0
libtpu: 0.0.40
codegen_flags: <defaults>
</compile_context>

<pallas_src>
import functools

import jax
import jax.numpy as jnp
from jax.experimental import pallas as pl
from jax.experimental.pallas import tpu as pltpu

HIDDEN = 16      # fixed by the PyTorch module: nn.Linear(obs_dim, 16)
_HID_PAD = 128   # lane-dense hidden width used only inside the kernel


def _round_up(n: int, m: int) -> int:
    return ((n + m - 1) // m) * m


def _policy_kernel(x_ref, w1_ref, b1_ref, w2_ref, b2_ref, out_ref):
    # Cast x to bf16 in VMEM (free under the MXU); f32 MXU accumulation.
    x = x_ref[...].astype(jnp.bfloat16)
    h = jnp.dot(x, w1_ref[...], preferred_element_type=jnp.float32)
    h = jnp.maximum(h + b1_ref[...], 0.0)
    logits = jnp.dot(h.astype(jnp.bfloat16), w2_ref[...],
                     preferred_element_type=jnp.float32)
    # Logical-width (lane-masked) store: only action_dim columns hit HBM.
    out_ref[...] = (logits + b2_ref[...]).astype(out_ref.dtype)


def prepare_params(w1_t, b1, w2_t, b2):
    """One-time prep: pad the hidden dim to 128 lanes and cast weights to
    bf16.  Accepts PyTorch-style 1-D biases or (1, H)-shaped biases."""
    b1 = jnp.asarray(b1).reshape(1, -1)
    b2 = jnp.asarray(b2).reshape(1, -1)
    obs_dim, hidden = w1_t.shape
    assert hidden == HIDDEN and w2_t.shape[0] == HIDDEN, "hidden width must be 16"
    assert b1.shape[1] == HIDDEN and b2.shape[1] == w2_t.shape[1]
    pad_h = _HID_PAD - hidden
    w1p = jnp.pad(w1_t, ((0, 0), (0, pad_h))).astype(jnp.bfloat16)
    b1p = jnp.pad(b1, ((0, 0), (0, pad_h))).astype(jnp.float32)
    w2p = jnp.pad(w2_t, ((0, pad_h), (0, 0))).astype(jnp.bfloat16)
    b2p = b2.astype(jnp.float32)
    return w1p, b1p, w2p, b2p


def _choose_tile_b(B: int, max_tile_b: int) -> int:
    if B < 8:
        return B  # single tile; block dim == full array dim is legal
    # At least two balanced tiles when B allows (v7x: 2 TensorCores), capped
    # so big batches amortize per-step overhead without large VMEM tiles
    # (tb=2048 x obs_dim f32 is only a few hundred KB double-buffered).
    half = -(-B // 2)
    return min(max_tile_b, _round_up(half, 8))


@functools.partial(jax.jit, static_argnames=("max_tile_b",))
def policy_forward(x, w1p, b1p, w2p, b2p, *, max_tile_b: int = 2048):
    """x: [B, obs_dim] f32; prepared params from `prepare_params`.
    Returns logits [B, action_dim] f32."""
    B, obs_dim = x.shape
    hid_p = w1p.shape[1]
    action_dim = w2p.shape[1]

    tb = _choose_tile_b(B, max_tile_b)
    n_tiles = pl.cdiv(B, tb)

    # Advisory cost from logical (unpadded) dims.
    flops = 2 * B * (obs_dim * HIDDEN + HIDDEN * action_dim)
    bytes_accessed = (x.size * 4 + w1p.size * 2 + w2p.size * 2
                      + b1p.size * 4 + b2p.size * 4 + B * action_dim * 4)

    return pl.pallas_call(
        _policy_kernel,
        out_shape=jax.ShapeDtypeStruct((B, action_dim), jnp.float32),
        grid=(n_tiles,),
        in_specs=[
            pl.BlockSpec((tb, obs_dim), lambda i: (i, 0)),        # x tile (f32)
            pl.BlockSpec((obs_dim, hid_p), lambda i: (0, 0)),     # W1 (resident)
            pl.BlockSpec((1, hid_p), lambda i: (0, 0)),           # b1
            pl.BlockSpec((hid_p, action_dim), lambda i: (0, 0)),  # W2 (resident)
            pl.BlockSpec((1, action_dim), lambda i: (0, 0)),      # b2
        ],
        out_specs=pl.BlockSpec((tb, action_dim), lambda i: (i, 0)),
        compiler_params=pltpu.CompilerParams(
            dimension_semantics=("parallel",)),
        cost_estimate=pl.CostEstimate(
            flops=flops, transcendentals=0, bytes_accessed=bytes_accessed),
    )(x, w1p, b1p, w2p, b2p)


def init_params(obs_dim: int, action_dim: int, key):
    """Deterministic init mimicking nn.Linear's U(-1/sqrt(fan_in), 1/sqrt(fan_in))."""
    k1, k2, k3, k4 = jax.random.split(key, 4)
    bound1 = 1.0 / jnp.sqrt(obs_dim)
    bound2 = 1.0 / jnp.sqrt(HIDDEN)
    # Stored transposed relative to PyTorch: [in, out]
    w1_t = jax.random.uniform(k1, (obs_dim, HIDDEN), jnp.float32, -bound1, bound1)
    b1 = jax.random.uniform(k2, (1, HIDDEN), jnp.float32, -bound1, bound1)
    w2_t = jax.random.uniform(k3, (HIDDEN, action_dim), jnp.float32, -bound2, bound2)
    b2 = jax.random.uniform(k4, (1, action_dim), jnp.float32, -bound2, bound2)
    return w1_t, b1, w2_t, b2


if __name__ == "__main__":
    key = jax.random.PRNGKey(0)
    k_params, k_x = jax.random.split(key)

    batch, obs_dim, action_dim = 8, 32, 4
    w1_t, b1, w2_t, b2 = init_params(obs_dim, action_dim, k_params)
    # One-time prep (pad + bf16 cast) -- kept OUT of the per-step forward.
    w1p, b1p, w2p, b2p = prepare_params(w1_t, b1, w2_t, b2)

    x = jax.random.normal(k_x, (batch, obs_dim), jnp.float32)

    logits = policy_forward(x, w1p, b1p, w2p, b2p)
    jax.block_until_ready(logits)
    assert logits.shape == (batch, action_dim)

    # Reference check #1: full-f32 module semantics (loose tol: kernel uses
    # bf16 matmul operands with f32 accumulation).
    ref_f32 = jnp.maximum(x @ w1_t + b1, 0.0) @ w2_t + b2
    assert jnp.allclose(logits, ref_f32, atol=5e-2, rtol=5e-2)

    # Reference check #2: same bf16-operand math as the kernel (tight tol).
    xh = x.astype(jnp.bfloat16)
    h_ref = jnp.maximum(
        jnp.dot(xh, w1_t.astype(jnp.bfloat16),
                preferred_element_type=jnp.float32) + b1, 0.0)
    ref_bf16 = jnp.dot(h_ref.astype(jnp.bfloat16), w2_t.astype(jnp.bfloat16),
                       preferred_element_type=jnp.float32) + b2
    assert jnp.allclose(logits, ref_bf16, atol=1e-3, rtol=1e-3)

    # Ragged, multi-tile batch: exercises the >=2-tile parallel grid and the
    # partial last block (no wrapper-side batch padding anywhere).
    big_x = jax.random.normal(jax.random.PRNGKey(1), (1000, obs_dim), jnp.float32)
    big_logits = policy_forward(big_x, w1p, b1p, w2p, b2p)
    jax.block_until_ready(big_logits)
    big_ref = jnp.maximum(big_x @ w1_t + b1, 0.0) @ w2_t + b2
    assert big_logits.shape == (1000, action_dim)
    assert jnp.allclose(big_logits, big_ref, atol=5e-2, rtol=5e-2)

    print("KERNEL_OK")
</pallas_src>

<mosaic_0001>
module attributes {stable_mosaic.version = 11 : i64} {
  func.func @_policy_kernel(%arg0: i32, %arg1: memref<8x32xf32, #tpu.memory_space<vmem>>, %arg2: memref<32x128xbf16, #tpu.memory_space<vmem>>, %arg3: memref<1x128xf32, #tpu.memory_space<vmem>>, %arg4: memref<128x4xbf16, #tpu.memory_space<vmem>>, %arg5: memref<1x4xf32, #tpu.memory_space<vmem>>, %arg6: memref<8x4xf32, #tpu.memory_space<vmem>>) attributes {dimension_semantics = [#tpu.dimension_semantics<parallel>], iteration_bounds = array<i64: 1>, scalar_prefetch = 0 : i64, scratch_operands = 0 : i64, tpu.core_type = #tpu.core_type<tc>, window_params = [{transform_indices = @transform_0, window_bounds = array<i64: 8, 32>}, {pipeline_mode = #tpu.pipeline_mode<synchronous>, transform_indices = @transform_1, window_bounds = array<i64: 32, 128>}, {pipeline_mode = #tpu.pipeline_mode<synchronous>, transform_indices = @transform_2, window_bounds = array<i64: 1, 128>}, {pipeline_mode = #tpu.pipeline_mode<synchronous>, transform_indices = @transform_3, window_bounds = array<i64: 128, 4>}, {pipeline_mode = #tpu.pipeline_mode<synchronous>, transform_indices = @transform_4, window_bounds = array<i64: 1, 4>}, {transform_indices = @transform_5, window_bounds = array<i64: 8, 4>}]} {
    %c0 = arith.constant 0 : index
    %c0_0 = arith.constant 0 : index
    %0 = vector.load %arg1[%c0, %c0_0] : memref<8x32xf32, #tpu.memory_space<vmem>>, vector<8x32xf32>
    %1 = arith.truncf %0 : vector<8x32xf32> to vector<8x32xbf16>
    %c0_1 = arith.constant 0 : index
    %c0_2 = arith.constant 0 : index
    %2 = vector.load %arg2[%c0_1, %c0_2] : memref<32x128xbf16, #tpu.memory_space<vmem>>, vector<32x128xbf16>
    %cst = arith.constant dense<0.000000e+00> : vector<8x128xf32>
    %3 = tpu.matmul %1, %2, %cst {dimension_numbers = #tpu.dot_dimension_numbers<[1], [0], [0], [1], [0, 0, 1, 1], [], []>} : vector<8x32xbf16>, vector<32x128xbf16>, vector<8x128xf32> -> vector<8x128xf32>
    %c0_3 = arith.constant 0 : index
    %c0_4 = arith.constant 0 : index
    %4 = vector.load %arg3[%c0_3, %c0_4] : memref<1x128xf32, #tpu.memory_space<vmem>>, vector<1x128xf32>
    %5 = vector.broadcast %4 : vector<1x128xf32> to vector<8x128xf32>
    %6 = arith.addf %3, %5 : vector<8x128xf32>
    %cst_5 = arith.constant 0.000000e+00 : f32
    %7 = vector.broadcast %cst_5 : f32 to vector<8x128xf32>
    %8 = arith.maximumf %6, %7 : vector<8x128xf32>
    %9 = arith.truncf %8 : vector<8x128xf32> to vector<8x128xbf16>
    %c0_6 = arith.constant 0 : index
    %c0_7 = arith.constant 0 : index
    %10 = vector.load %arg4[%c0_6, %c0_7] : memref<128x4xbf16, #tpu.memory_space<vmem>>, vector<128x4xbf16>
    %cst_8 = arith.constant dense<0.000000e+00> : vector<8x4xf32>
    %11 = tpu.matmul %9, %10, %cst_8 {dimension_numbers = #tpu.dot_dimension_numbers<[1], [0], [0], [1], [0, 0, 1, 1], [], []>} : vector<8x128xbf16>, vector<128x4xbf16>, vector<8x4xf32> -> vector<8x4xf32>
    %c0_9 = arith.constant 0 : index
    %c0_10 = arith.constant 0 : index
    %12 = vector.load %arg5[%c0_9, %c0_10] : memref<1x4xf32, #tpu.memory_space<vmem>>, vector<1x4xf32>
    %13 = vector.broadcast %12 : vector<1x4xf32> to vector<8x4xf32>
    %14 = arith.addf %11, %13 : vector<8x4xf32>
    %c0_11 = arith.constant 0 : index
    %c0_12 = arith.constant 0 : index
    %15 = vector.load %arg6[%c0_11, %c0_12] : memref<8x4xf32, #tpu.memory_space<vmem>>, vector<8x4xf32>
    tpu.vector_store %arg6[%c0_11, %c0_12], %14 {strides = array<i32>} : memref<8x4xf32, #tpu.memory_space<vmem>>, vector<8x4xf32>,
    return
  }
  func.func @transform_0(%arg0: i32) -> (i32, i32) {
    %c0_i32 = arith.constant 0 : i32
    %c0_i32_0 = arith.constant 0 : i32
    return %arg0, %c0_i32 : i32, i32
  }
  func.func @transform_1(%arg0: i32) -> (i32, i32) {
    %c0_i32 = arith.constant 0 : i32
    %c0_i32_0 = arith.constant 0 : i32
    %c0_i32_1 = arith.constant 0 : i32
    return %c0_i32, %c0_i32_0 : i32, i32
  }
  func.func @transform_2(%arg0: i32) -> (i32, i32) {
    %c0_i32 = arith.constant 0 : i32
    %c0_i32_0 = arith.constant 0 : i32
    %c0_i32_1 = arith.constant 0 : i32
    return %c0_i32, %c0_i32_0 : i32, i32
  }
  func.func @transform_3(%arg0: i32) -> (i32, i32) {
    %c0_i32 = arith.constant 0 : i32
    %c0_i32_0 = arith.constant 0 : i32
    %c0_i32_1 = arith.constant 0 : i32
    return %c0_i32, %c0_i32_0 : i32, i32
  }
  func.func @transform_4(%arg0: i32) -> (i32, i32) {
    %c0_i32 = arith.constant 0 : i32
    %c0_i32_0 = arith.constant 0 : i32
    %c0_i32_1 = arith.constant 0 : i32
    return %c0_i32, %c0_i32_0 : i32, i32
  }
  func.func @transform_5(%arg0: i32) -> (i32, i32) {
    %c0_i32 = arith.constant 0 : i32
    %c0_i32_0 = arith.constant 0 : i32
    return %arg0, %c0_i32 : i32, i32
  }
}

</mosaic_0001>

<llo_original>
// kernel: policy_forward.1
$region0: #{policy_forward.1}
  #allocation0 [shape = 'u32[]', space=smem, size = 0x4, offset = 0x4, fixed_abs, tag = 'smem constant byte address 0x4 - core index']
  #allocation1 [shape = 'u32[72,128]{1,0:T(1,128)}', space=vmem, size = 0x9000, scoped, tag = 'internal scratch']
  %s0 = inlined_call_operand.vmem [shape: f32[8,32], index: 0, kind: input, shape index: {}]
  %s1 = inlined_call_operand.vmem [shape: bf16[32,128], index: 1, kind: input, shape index: {}]
  %s2 = inlined_call_operand.vmem [shape: f32[1,128], index: 2, kind: input, shape index: {}]
  %s3 = inlined_call_operand.vmem [shape: bf16[128,4], index: 3, kind: input, shape index: {}]
  %s4 = inlined_call_operand.vmem [shape: f32[1,4], index: 4, kind: input, shape index: {}]
  %s5 = inlined_call_operand.vmem [shape: f32[8,4], index: 5, kind: output, shape index: {}]
  %s6 = sld [smem:[#allocation0]]
  $region30: #{policy_forward.1} parent=0
    _
  %s8 = ssub.s32 1, %s6
  %s9 = scalar_select 0, %s8, %s6
  // Predicated region
  $region2: #{policy_forward.1} parent=0 // pred_check
    _
  $region3: #{policy_forward.1} parent=0 // pred_check_branch
    %11 = sbr.rel (0) target = $region5
  $region4: #{policy_forward.1} parent=0 // pred_region
    _
  $region5: #{policy_forward.1} parent=0 // pred_fallthru
    _
  // Predicated region
  $region6: #{policy_forward.1} parent=0 // pred_check
    _
  $region7: #{policy_forward.1} parent=0 // pred_check_branch
    %13 = sbr.rel (0) target = $region9
  $region8: #{policy_forward.1} parent=0 // pred_region
    _
  $region9: #{policy_forward.1} parent=0 // pred_fallthru
    _
  // Predicated region
  $region10: #{policy_forward.1} parent=0 // pred_check
    _
  $region11: #{policy_forward.1} parent=0 // pred_check_branch
    %15 = sbr.rel (0) target = $region13
  $region12: #{policy_forward.1} parent=0 // pred_region
    _
  $region13: #{policy_forward.1} parent=0 // pred_fallthru
    _
  // Predicated region
  $region14: #{policy_forward.1} parent=0 // pred_check
    _
  $region15: #{policy_forward.1} parent=0 // pred_check_branch
    %17 = sbr.rel (0) target = $region17
  $region16: #{policy_forward.1} parent=0 // pred_region
    _
  $region17: #{policy_forward.1} parent=0 // pred_fallthru
    _
  // Predicated region
  $region18: #{policy_forward.1} parent=0 // pred_check
    _
  $region19: #{policy_forward.1} parent=0 // pred_check_branch
    %19 = sbr.rel (0) target = $region21
  $region20: #{policy_forward.1} parent=0 // pred_region
    _
  $region21: #{policy_forward.1} parent=0 // pred_fallthru
    _
  %v21 = vld [vmem:[%s0] sm:$0xff]
  %v22 = vpack.c.bf16 %v21, %v21
  %v23 = vld [vmem:[%s1] sm:$0xf]
  %v24 = vld [vmem:[%s1 + $0x4] sm:$0xf]
  %v25 = vld [vmem:[%s1 + $0x8] sm:$0xf]
  %v26 = vld [vmem:[%s1 + $0xc] sm:$0xf]
  %v27 = vld [vmem:[%s2] sm:$0x1]
  %v29 = vperm.slane %v27, 0
  %v35 = vunpack.c.l.b16 %v23
  %v36 = vunpack.c.l.b16 %v24
  %v37 = vunpack.c.l.b16 %v25
  %v38 = vunpack.c.l.b16 %v26
  %v39 = vpack.c.b16 %v36, %v35
  %v40 = vpack.c.b16 %v38, %v37
  %vm43 = vcmask 261120
  %v45 = vsel %vm43, %v22, 0
  %47 = vmatpush.bf16.msra.mxu0 0
  %48 = vmatpush.bf16.msra.mxu0 0
  %49 = vmatpush.bf16.msra.mxu0 0
  %50 = vmatpush.bf16.msra.mxu0 0
  %51 = vmatpush.bf16.msra.mxu0 0
  %52 = vmatpush.bf16.msra.mxu0 0
  %53 = vmatpush.bf16.msra.mxu0 %v40
  %54 = vmatpush.bf16.msra.mxu0 %v39
  %55 = vmatmul.bf16.gmra.mxu0 %v45
  %v56 = vpop.f32.mrf.mxu0
  %v57 = vadd.f32 %v29, %v56
  %v58 = vpop.f32.mrf.mxu0
  %59 = vdwg.mxu0
  %v60 = vmax.f32 %v57, 0.0
  %v61 = vpack.c.bf16 %v60, %v60
  %v62 = vld [vmem:[%s3] sm:$0xf]
  %v63 = vld [vmem:[%s3 + $0x4] sm:$0xf]
  %v64 = vld [vmem:[%s3 + $0x8] sm:$0xf]
  %v65 = vld [vmem:[%s3 + $0xc] sm:$0xf]
  %v66 = vld [vmem:[%s3 + $0x10] sm:$0xf]
  %v67 = vld [vmem:[%s3 + $0x14] sm:$0xf]
  %v68 = vld [vmem:[%s3 + $0x18] sm:$0xf]
  %v69 = vld [vmem:[%s3 + $0x1c] sm:$0xf]
  %v70 = vld [vmem:[%s3 + $0x20] sm:$0xf]
  %v71 = vld [vmem:[%s3 + $0x24] sm:$0xf]
  %v72 = vld [vmem:[%s3 + $0x28] sm:$0xf]
  %v73 = vld [vmem:[%s3 + $0x2c] sm:$0xf]
  %v74 = vld [vmem:[%s3 + $0x30] sm:$0xf]
  %v75 = vld [vmem:[%s3 + $0x34] sm:$0xf]
  %v76 = vld [vmem:[%s3 + $0x38] sm:$0xf]
  %v77 = vld [vmem:[%s3 + $0x3c] sm:$0xf]
  %v78 = vld [vmem:[%s4] sm:$0x1]
  %v80 = vperm.slane %v78, 0
  %v98 = vunpack.c.l.b16 %v62
  %v99 = vunpack.c.l.b16 %v63
  %v100 = vunpack.c.l.b16 %v64
  %v101 = vunpack.c.l.b16 %v65
  %v102 = vunpack.c.l.b16 %v66
  %v103 = vunpack.c.l.b16 %v67
  %v104 = vunpack.c.l.b16 %v68
  %v105 = vunpack.c.l.b16 %v69
  %v106 = vunpack.c.l.b16 %v70
  %v107 = vunpack.c.l.b16 %v71
  %v108 = vunpack.c.l.b16 %v72
  %v109 = vunpack.c.l.b16 %v73
  %v110 = vunpack.c.l.b16 %v74
  %v111 = vunpack.c.l.b16 %v75
  %v112 = vunpack.c.l.b16 %v76
  %v113 = vunpack.c.l.b16 %v77
  %v114 = vpack.c.b16 %v99, %v98
  %v115 = vpack.c.b16 %v101, %v100
  %v116 = vpack.c.b16 %v103, %v102
  %v117 = vpack.c.b16 %v105, %v104
  %v118 = vpack.c.b16 %v107, %v106
  %v119 = vpack.c.b16 %v109, %v108
  %v120 = vpack.c.b16 %v111, %v110
  %v121 = vpack.c.b16 %v113, %v112
  %130 = vmatpush.bf16.msra.mxu0 %v121
  %131 = vmatpush.bf16.msra.mxu0 %v120
  %132 = vmatpush.bf16.msra.mxu0 %v119
  %133 = vmatpush.bf16.msra.mxu0 %v118
  %134 = vmatpush.bf16.msra.mxu0 %v117
  %135 = vmatpush.bf16.msra.mxu0 %v116
  %136 = vmatpush.bf16.msra.mxu0 %v115
  %137 = vmatpush.bf16.msra.mxu0 %v114
  %138 = vmatmul.bf16.gmra.mxu0 %v61
  %v139 = vpop.f32.mrf.mxu0
  %v140 = vadd.f32 %v80, %v139
  %v141 = vpop.f32.mrf.mxu0
  %142 = vdwg.mxu0
  %vm143 = vcmask 31744
  %144 = vst.msk [vmem:[%s5] sm:$0xff] %vm143, %v140
  // Predicated region
  $region22: #{policy_forward.1} parent=0 // pred_check
    _
  $region23: #{policy_forward.1} parent=0 // pred_check_branch
    %146 = sbr.rel (0) target = $region25
  $region24: #{policy_forward.1} parent=0 // pred_region
    _
  $region25: #{policy_forward.1} parent=0 // pred_fallthru
    _
  // Predicated region
  $region26: #{policy_forward.1} parent=0 // pred_check
    _
  $region27: #{policy_forward.1} parent=0 // pred_check_branch
    %148 = sbr.rel (0) target = $region29
  $region28: #{policy_forward.1} parent=0 // pred_region
    _
  $region29: #{policy_forward.1} parent=0 // pred_fallthru
    _

</llo_original>
